<compile_context>
chip_gen: v7x
topology: tpu7x:2x2x1
jax: 0.10.0
libtpu: 0.0.40
codegen_flags: <defaults>
</compile_context>

<pallas_src>
import jax
import jax.numpy as jnp
from jax import lax
from jax.experimental import pallas as pl
from jax.experimental.pallas import tpu as pltpu


def gru_head_kernel(x_ref, wih_ref, whh_ref, bcomb_ref, bhhn_ref,
                    wout_ref, bout_ref, out_ref, gi_ref):
    """Single-invocation GRU + linear head.

    x_ref     : (S*B, A)   flattened action sequence
    wih_ref   : (A, 3H)    W_ih^T, gate order [r, z, n]
    whh_ref   : (H, 3H)    W_hh^T, gate order [r, z, n]
    bcomb_ref : (1, 3H)    [b_ir+b_hr, b_iz+b_hz, b_in]
    bhhn_ref  : (1, H)     b_hn (kept separate: lives inside r * (...))
    wout_ref  : (H, 2A)    W_out^T
    bout_ref  : (1, 2A)
    out_ref   : (B, 2A)    raw linear head output [mu | logstd]
    gi_ref    : (S*B, 3H)  VMEM scratch for the hoisted input projection
    """
    SB, _ = x_ref.shape
    H = whh_ref.shape[0]
    B = out_ref.shape[0]
    S = SB // B

    # Hoisted, time-parallel input projection for ALL timesteps at once:
    # one (S*B, A) x (A, 3H) matmul instead of S tiny (B, A) matmuls.
    gi_ref[...] = (
        jnp.dot(x_ref[...], wih_ref[...], preferred_element_type=jnp.float32)
        + bcomb_ref[...]
    )

    whh = whh_ref[...]        # (H, 3H) -- load once, reuse every step
    bhh_n = bhhn_ref[...]     # (1, H)

    h = jnp.zeros((B, H), jnp.float32)
    # Serial recurrence: statically unrolled (S is small and static), only
    # the hidden projection remains on the critical path.
    for t in range(S):
        gi_t = gi_ref[pl.ds(t * B, B), :]                       # (B, 3H)
        gh = jnp.dot(h, whh, preferred_element_type=jnp.float32)  # (B, 3H)

        r = jax.nn.sigmoid(gi_t[:, 0:H] + gh[:, 0:H])
        z = jax.nn.sigmoid(gi_t[:, H:2 * H] + gh[:, H:2 * H])
        n = jnp.tanh(gi_t[:, 2 * H:3 * H] + r * (gh[:, 2 * H:3 * H] + bhh_n))
        h = (1.0 - z) * n + z * h

    # Linear head on the last hidden state; single lane-dense (B, 2A) store.
    out_ref[...] = (
        jnp.dot(h, wout_ref[...], preferred_element_type=jnp.float32)
        + bout_ref[...]
    )


def continuous_action_gru_forward(actions, params):
    """actions: (S, B, A) float32.  Returns (mu, std), each (B, A)."""
    S, B, A = actions.shape
    H = params["whh"].shape[1]          # whh: (3H, H)

    wih_t = params["wih"].T             # (A, 3H)
    whh_t = params["whh"].T             # (H, 3H)
    bih = params["bih"]                 # (3H,)  order [r, z, n]
    bhh = params["bhh"]                 # (3H,)
    # Fold b_hh into the hoisted input projection for r and z (they are only
    # ever summed); keep b_hn separate for the n gate.
    b_comb = jnp.concatenate(
        [bih[:2 * H] + bhh[:2 * H], bih[2 * H:]]).reshape(1, 3 * H)
    bhh_n = bhh[2 * H:].reshape(1, H)
    wout_t = params["wout"].T           # (H, 2A)
    bout = params["bout"].reshape(1, 2 * A)

    x_flat = actions.reshape(S * B, A)  # flatten time into the M dimension

    vspec = pl.BlockSpec(memory_space=pltpu.MemorySpace.VMEM)
    out = pl.pallas_call(
        gru_head_kernel,
        out_shape=jax.ShapeDtypeStruct((B, 2 * A), jnp.float32),
        in_specs=[vspec] * 7,
        out_specs=vspec,
        scratch_shapes=[pltpu.VMEM((S * B, 3 * H), jnp.float32)],
    )(x_flat, wih_t, whh_t, b_comb, bhh_n, wout_t, bout)

    mu = out[:, :A]
    std = jnp.exp(out[:, A:])           # Normal(mu, logstd.exp())
    return mu, std


def init_params(key, action_dims, hidden_dims):
    """Deterministic PyTorch-style init: uniform(-1/sqrt(H), 1/sqrt(H))."""
    k = 1.0 / jnp.sqrt(jnp.float32(hidden_dims))
    keys = jax.random.split(key, 6)
    u = lambda kk, shape: jax.random.uniform(kk, shape, jnp.float32, -k, k)
    return {
        "wih": u(keys[0], (3 * hidden_dims, action_dims)),
        "whh": u(keys[1], (3 * hidden_dims, hidden_dims)),
        "bih": u(keys[2], (3 * hidden_dims,)),
        "bhh": u(keys[3], (3 * hidden_dims,)),
        "wout": u(keys[4], (2 * action_dims, hidden_dims)),
        "bout": u(keys[5], (2 * action_dims,)),
    }


def reference_forward(actions, params):
    """Pure-JAX reference (lax.scan GRU, PyTorch gate order) for correctness."""
    S, B, A = actions.shape
    H = params["whh"].shape[1]
    h0 = jnp.zeros((B, H), jnp.float32)

    def step(h, x):
        gi = x @ params["wih"].T + params["bih"]
        gh = h @ params["whh"].T + params["bhh"]
        i_r, i_z, i_n = gi[:, :H], gi[:, H:2 * H], gi[:, 2 * H:]
        h_r, h_z, h_n = gh[:, :H], gh[:, H:2 * H], gh[:, 2 * H:]
        r = jax.nn.sigmoid(i_r + h_r)
        z = jax.nn.sigmoid(i_z + h_z)
        n = jnp.tanh(i_n + r * h_n)
        h_new = (1.0 - z) * n + z * h
        return h_new, h_new

    h_last, _ = lax.scan(step, h0, actions)
    out = h_last @ params["wout"].T + params["bout"]
    return out[:, :A], jnp.exp(out[:, A:])


if __name__ == "__main__":
    SEQ, BATCH, ACTION_DIMS, HIDDEN_DIMS = 8, 2, 4, 32

    root = jax.random.PRNGKey(0)
    k_in, k_par = jax.random.split(root)

    actions = jax.random.normal(k_in, (SEQ, BATCH, ACTION_DIMS), jnp.float32)
    params = init_params(k_par, ACTION_DIMS, HIDDEN_DIMS)

    mu, std = continuous_action_gru_forward(actions, params)
    mu, std = jax.block_until_ready(mu), jax.block_until_ready(std)

    mu_ref, std_ref = reference_forward(actions, params)
    assert jnp.allclose(mu, mu_ref, atol=1e-5), "mu mismatch vs reference"
    assert jnp.allclose(std, std_ref, atol=1e-5), "std mismatch vs reference"

    # TODO(synk): torch.distributions.Normal object / get_log_probs helpers are
    # not kernel work; the kernel returns (mu, std) which fully parameterize it.
    print("KERNEL_OK")
</pallas_src>

<mosaic_0001>
module attributes {stable_mosaic.version = 11 : i64} {
  func.func @gru_head_kernel(%arg0: memref<16x4xf32, #tpu.memory_space<vmem>>, %arg1: memref<4x96xf32, #tpu.memory_space<vmem>>, %arg2: memref<32x96xf32, #tpu.memory_space<vmem>>, %arg3: memref<1x96xf32, #tpu.memory_space<vmem>>, %arg4: memref<1x32xf32, #tpu.memory_space<vmem>>, %arg5: memref<32x8xf32, #tpu.memory_space<vmem>>, %arg6: memref<1x8xf32, #tpu.memory_space<vmem>>, %arg7: memref<2x8xf32, #tpu.memory_space<vmem>>, %arg8: memref<16x96xf32, #tpu.memory_space<vmem>>) attributes {dimension_semantics = [], scalar_prefetch = 0 : i64, scratch_operands = 1 : i64, tpu.core_type = #tpu.core_type<tc>} {
    %c0 = arith.constant 0 : index
    %c0_0 = arith.constant 0 : index
    %0 = vector.load %arg0[%c0, %c0_0] : memref<16x4xf32, #tpu.memory_space<vmem>>, vector<16x4xf32>
    %c0_1 = arith.constant 0 : index
    %c0_2 = arith.constant 0 : index
    %1 = vector.load %arg1[%c0_1, %c0_2] : memref<4x96xf32, #tpu.memory_space<vmem>>, vector<4x96xf32>
    %cst = arith.constant dense<0.000000e+00> : vector<16x96xf32>
    %2 = tpu.matmul %0, %1, %cst {dimension_numbers = #tpu.dot_dimension_numbers<[1], [0], [0], [1], [0, 0, 1, 1], [], []>} : vector<16x4xf32>, vector<4x96xf32>, vector<16x96xf32> -> vector<16x96xf32>
    %c0_3 = arith.constant 0 : index
    %c0_4 = arith.constant 0 : index
    %3 = vector.load %arg3[%c0_3, %c0_4] : memref<1x96xf32, #tpu.memory_space<vmem>>, vector<1x96xf32>
    %4 = vector.broadcast %3 : vector<1x96xf32> to vector<16x96xf32>
    %5 = arith.addf %2, %4 : vector<16x96xf32>
    %c0_5 = arith.constant 0 : index
    %c0_6 = arith.constant 0 : index
    %6 = vector.load %arg8[%c0_5, %c0_6] : memref<16x96xf32, #tpu.memory_space<vmem>>, vector<16x96xf32>
    tpu.vector_store %arg8[%c0_5, %c0_6], %5 {strides = array<i32>} : memref<16x96xf32, #tpu.memory_space<vmem>>, vector<16x96xf32>,
    %c0_7 = arith.constant 0 : index
    %c0_8 = arith.constant 0 : index
    %7 = vector.load %arg2[%c0_7, %c0_8] : memref<32x96xf32, #tpu.memory_space<vmem>>, vector<32x96xf32>
    %c0_9 = arith.constant 0 : index
    %c0_10 = arith.constant 0 : index
    %8 = vector.load %arg4[%c0_9, %c0_10] : memref<1x32xf32, #tpu.memory_space<vmem>>, vector<1x32xf32>
    %cst_11 = arith.constant 0.000000e+00 : f32
    %9 = vector.broadcast %cst_11 : f32 to vector<2x32xf32>
    %c0_12 = arith.constant 0 : index
    %c0_13 = arith.constant 0 : index
    %10 = vector.load %arg8[%c0_12, %c0_13] : memref<16x96xf32, #tpu.memory_space<vmem>>, vector<2x96xf32>
    %cst_14 = arith.constant dense<0.000000e+00> : vector<2x96xf32>
    %11 = tpu.matmul %9, %7, %cst_14 {dimension_numbers = #tpu.dot_dimension_numbers<[1], [0], [0], [1], [0, 0, 1, 1], [], []>} : vector<2x32xf32>, vector<32x96xf32>, vector<2x96xf32> -> vector<2x96xf32>
    %12 = vector.extract_strided_slice %10 {offsets = [0, 0], sizes = [2, 32], strides = [1, 1]} : vector<2x96xf32> to vector<2x32xf32>
    %13 = vector.extract_strided_slice %11 {offsets = [0, 0], sizes = [2, 32], strides = [1, 1]} : vector<2x96xf32> to vector<2x32xf32>
    %14 = arith.addf %12, %13 : vector<2x32xf32>
    %15 = arith.negf %14 : vector<2x32xf32>
    %16 = math.exp %15 : vector<2x32xf32>
    %cst_15 = arith.constant 1.000000e+00 : f32
    %17 = vector.broadcast %cst_15 : f32 to vector<2x32xf32>
    %18 = arith.addf %17, %16 : vector<2x32xf32>
    %19 = arith.divf %17, %18 : vector<2x32xf32>
    %20 = vector.extract_strided_slice %10 {offsets = [0, 32], sizes = [2, 32], strides = [1, 1]} : vector<2x96xf32> to vector<2x32xf32>
    %21 = vector.extract_strided_slice %11 {offsets = [0, 32], sizes = [2, 32], strides = [1, 1]} : vector<2x96xf32> to vector<2x32xf32>
    %22 = arith.addf %20, %21 : vector<2x32xf32>
    %23 = arith.negf %22 : vector<2x32xf32>
    %24 = math.exp %23 : vector<2x32xf32>
    %cst_16 = arith.constant 1.000000e+00 : f32
    %25 = vector.broadcast %cst_16 : f32 to vector<2x32xf32>
    %26 = arith.addf %25, %24 : vector<2x32xf32>
    %27 = arith.divf %25, %26 : vector<2x32xf32>
    %28 = vector.extract_strided_slice %10 {offsets = [0, 64], sizes = [2, 32], strides = [1, 1]} : vector<2x96xf32> to vector<2x32xf32>
    %29 = vector.extract_strided_slice %11 {offsets = [0, 64], sizes = [2, 32], strides = [1, 1]} : vector<2x96xf32> to vector<2x32xf32>
    %30 = vector.broadcast %8 : vector<1x32xf32> to vector<2x32xf32>
    %31 = arith.addf %29, %30 : vector<2x32xf32>
    %32 = arith.mulf %19, %31 : vector<2x32xf32>
    %33 = arith.addf %28, %32 : vector<2x32xf32>
    %34 = math.tanh %33 : vector<2x32xf32>
    %cst_17 = arith.constant 1.000000e+00 : f32
    %35 = vector.broadcast %cst_17 : f32 to vector<2x32xf32>
    %36 = arith.subf %35, %27 : vector<2x32xf32>
    %37 = arith.mulf %36, %34 : vector<2x32xf32>
    %38 = arith.mulf %27, %9 : vector<2x32xf32>
    %39 = arith.addf %37, %38 : vector<2x32xf32>
    %c2 = arith.constant 2 : index
    %c0_18 = arith.constant 0 : index
    %40 = vector.load %arg8[%c2, %c0_18] : memref<16x96xf32, #tpu.memory_space<vmem>>, vector<2x96xf32>
    %cst_19 = arith.constant dense<0.000000e+00> : vector<2x96xf32>
    %41 = tpu.matmul %39, %7, %cst_19 {dimension_numbers = #tpu.dot_dimension_numbers<[1], [0], [0], [1], [0, 0, 1, 1], [], []>} : vector<2x32xf32>, vector<32x96xf32>, vector<2x96xf32> -> vector<2x96xf32>
    %42 = vector.extract_strided_slice %40 {offsets = [0, 0], sizes = [2, 32], strides = [1, 1]} : vector<2x96xf32> to vector<2x32xf32>
    %43 = vector.extract_strided_slice %41 {offsets = [0, 0], sizes = [2, 32], strides = [1, 1]} : vector<2x96xf32> to vector<2x32xf32>
    %44 = arith.addf %42, %43 : vector<2x32xf32>
    %45 = arith.negf %44 : vector<2x32xf32>
    %46 = math.exp %45 : vector<2x32xf32>
    %cst_20 = arith.constant 1.000000e+00 : f32
    %47 = vector.broadcast %cst_20 : f32 to vector<2x32xf32>
    %48 = arith.addf %47, %46 : vector<2x32xf32>
    %49 = arith.divf %47, %48 : vector<2x32xf32>
    %50 = vector.extract_strided_slice %40 {offsets = [0, 32], sizes = [2, 32], strides = [1, 1]} : vector<2x96xf32> to vector<2x32xf32>
    %51 = vector.extract_strided_slice %41 {offsets = [0, 32], sizes = [2, 32], strides = [1, 1]} : vector<2x96xf32> to vector<2x32xf32>
    %52 = arith.addf %50, %51 : vector<2x32xf32>
    %53 = arith.negf %52 : vector<2x32xf32>
    %54 = math.exp %53 : vector<2x32xf32>
    %cst_21 = arith.constant 1.000000e+00 : f32
    %55 = vector.broadcast %cst_21 : f32 to vector<2x32xf32>
    %56 = arith.addf %55, %54 : vector<2x32xf32>
    %57 = arith.divf %55, %56 : vector<2x32xf32>
    %58 = vector.extract_strided_slice %40 {offsets = [0, 64], sizes = [2, 32], strides = [1, 1]} : vector<2x96xf32> to vector<2x32xf32>
    %59 = vector.extract_strided_slice %41 {offsets = [0, 64], sizes = [2, 32], strides = [1, 1]} : vector<2x96xf32> to vector<2x32xf32>
    %60 = vector.broadcast %8 : vector<1x32xf32> to vector<2x32xf32>
    %61 = arith.addf %59, %60 : vector<2x32xf32>
    %62 = arith.mulf %49, %61 : vector<2x32xf32>
    %63 = arith.addf %58, %62 : vector<2x32xf32>
    %64 = math.tanh %63 : vector<2x32xf32>
    %cst_22 = arith.constant 1.000000e+00 : f32
    %65 = vector.broadcast %cst_22 : f32 to vector<2x32xf32>
    %66 = arith.subf %65, %57 : vector<2x32xf32>
    %67 = arith.mulf %66, %64 : vector<2x32xf32>
    %68 = arith.mulf %57, %39 : vector<2x32xf32>
    %69 = arith.addf %67, %68 : vector<2x32xf32>
    %c4 = arith.constant 4 : index
    %c0_23 = arith.constant 0 : index
    %70 = vector.load %arg8[%c4, %c0_23] : memref<16x96xf32, #tpu.memory_space<vmem>>, vector<2x96xf32>
    %cst_24 = arith.constant dense<0.000000e+00> : vector<2x96xf32>
    %71 = tpu.matmul %69, %7, %cst_24 {dimension_numbers = #tpu.dot_dimension_numbers<[1], [0], [0], [1], [0, 0, 1, 1], [], []>} : vector<2x32xf32>, vector<32x96xf32>, vector<2x96xf32> -> vector<2x96xf32>
    %72 = vector.extract_strided_slice %70 {offsets = [0, 0], sizes = [2, 32], strides = [1, 1]} : vector<2x96xf32> to vector<2x32xf32>
    %73 = vector.extract_strided_slice %71 {offsets = [0, 0], sizes = [2, 32], strides = [1, 1]} : vector<2x96xf32> to vector<2x32xf32>
    %74 = arith.addf %72, %73 : vector<2x32xf32>
    %75 = arith.negf %74 : vector<2x32xf32>
    %76 = math.exp %75 : vector<2x32xf32>
    %cst_25 = arith.constant 1.000000e+00 : f32
    %77 = vector.broadcast %cst_25 : f32 to vector<2x32xf32>
    %78 = arith.addf %77, %76 : vector<2x32xf32>
    %79 = arith.divf %77, %78 : vector<2x32xf32>
    %80 = vector.extract_strided_slice %70 {offsets = [0, 32], sizes = [2, 32], strides = [1, 1]} : vector<2x96xf32> to vector<2x32xf32>
    %81 = vector.extract_strided_slice %71 {offsets = [0, 32], sizes = [2, 32], strides = [1, 1]} : vector<2x96xf32> to vector<2x32xf32>
    %82 = arith.addf %80, %81 : vector<2x32xf32>
    %83 = arith.negf %82 : vector<2x32xf32>
    %84 = math.exp %83 : vector<2x32xf32>
    %cst_26 = arith.constant 1.000000e+00 : f32
    %85 = vector.broadcast %cst_26 : f32 to vector<2x32xf32>
    %86 = arith.addf %85, %84 : vector<2x32xf32>
    %87 = arith.divf %85, %86 : vector<2x32xf32>
    %88 = vector.extract_strided_slice %70 {offsets = [0, 64], sizes = [2, 32], strides = [1, 1]} : vector<2x96xf32> to vector<2x32xf32>
    %89 = vector.extract_strided_slice %71 {offsets = [0, 64], sizes = [2, 32], strides = [1, 1]} : vector<2x96xf32> to vector<2x32xf32>
    %90 = vector.broadcast %8 : vector<1x32xf32> to vector<2x32xf32>
    %91 = arith.addf %89, %90 : vector<2x32xf32>
    %92 = arith.mulf %79, %91 : vector<2x32xf32>
    %93 = arith.addf %88, %92 : vector<2x32xf32>
    %94 = math.tanh %93 : vector<2x32xf32>
    %cst_27 = arith.constant 1.000000e+00 : f32
    %95 = vector.broadcast %cst_27 : f32 to vector<2x32xf32>
    %96 = arith.subf %95, %87 : vector<2x32xf32>
    %97 = arith.mulf %96, %94 : vector<2x32xf32>
    %98 = arith.mulf %87, %69 : vector<2x32xf32>
    %99 = arith.addf %97, %98 : vector<2x32xf32>
    %c6 = arith.constant 6 : index
    %c0_28 = arith.constant 0 : index
    %100 = vector.load %arg8[%c6, %c0_28] : memref<16x96xf32, #tpu.memory_space<vmem>>, vector<2x96xf32>
    %cst_29 = arith.constant dense<0.000000e+00> : vector<2x96xf32>
    %101 = tpu.matmul %99, %7, %cst_29 {dimension_numbers = #tpu.dot_dimension_numbers<[1], [0], [0], [1], [0, 0, 1, 1], [], []>} : vector<2x32xf32>, vector<32x96xf32>, vector<2x96xf32> -> vector<2x96xf32>
    %102 = vector.extract_strided_slice %100 {offsets = [0, 0], sizes = [2, 32], strides = [1, 1]} : vector<2x96xf32> to vector<2x32xf32>
    %103 = vector.extract_strided_slice %101 {offsets = [0, 0], sizes = [2, 32], strides = [1, 1]} : vector<2x96xf32> to vector<2x32xf32>
    %104 = arith.addf %102, %103 : vector<2x32xf32>
    %105 = arith.negf %104 : vector<2x32xf32>
    %106 = math.exp %105 : vector<2x32xf32>
    %cst_30 = arith.constant 1.000000e+00 : f32
    %107 = vector.broadcast %cst_30 : f32 to vector<2x32xf32>
    %108 = arith.addf %107, %106 : vector<2x32xf32>
    %109 = arith.divf %107, %108 : vector<2x32xf32>
    %110 = vector.extract_strided_slice %100 {offsets = [0, 32], sizes = [2, 32], strides = [1, 1]} : vector<2x96xf32> to vector<2x32xf32>
    %111 = vector.extract_strided_slice %101 {offsets = [0, 32], sizes = [2, 32], strides = [1, 1]} : vector<2x96xf32> to vector<2x32xf32>
    %112 = arith.addf %110, %111 : vector<2x32xf32>
    %113 = arith.negf %112 : vector<2x32xf32>
    %114 = math.exp %113 : vector<2x32xf32>
    %cst_31 = arith.constant 1.000000e+00 : f32
    %115 = vector.broadcast %cst_31 : f32 to vector<2x32xf32>
    %116 = arith.addf %115, %114 : vector<2x32xf32>
    %117 = arith.divf %115, %116 : vector<2x32xf32>
    %118 = vector.extract_strided_slice %100 {offsets = [0, 64], sizes = [2, 32], strides = [1, 1]} : vector<2x96xf32> to vector<2x32xf32>
    %119 = vector.extract_strided_slice %101 {offsets = [0, 64], sizes = [2, 32], strides = [1, 1]} : vector<2x96xf32> to vector<2x32xf32>
    %120 = vector.broadcast %8 : vector<1x32xf32> to vector<2x32xf32>
    %121 = arith.addf %119, %120 : vector<2x32xf32>
    %122 = arith.mulf %109, %121 : vector<2x32xf32>
    %123 = arith.addf %118, %122 : vector<2x32xf32>
    %124 = math.tanh %123 : vector<2x32xf32>
    %cst_32 = arith.constant 1.000000e+00 : f32
    %125 = vector.broadcast %cst_32 : f32 to vector<2x32xf32>
    %126 = arith.subf %125, %117 : vector<2x32xf32>
    %127 = arith.mulf %126, %124 : vector<2x32xf32>
    %128 = arith.mulf %117, %99 : vector<2x32xf32>
    %129 = arith.addf %127, %128 : vector<2x32xf32>
    %c8 = arith.constant 8 : index
    %c0_33 = arith.constant 0 : index
    %130 = vector.load %arg8[%c8, %c0_33] : memref<16x96xf32, #tpu.memory_space<vmem>>, vector<2x96xf32>
    %cst_34 = arith.constant dense<0.000000e+00> : vector<2x96xf32>
    %131 = tpu.matmul %129, %7, %cst_34 {dimension_numbers = #tpu.dot_dimension_numbers<[1], [0], [0], [1], [0, 0, 1, 1], [], []>} : vector<2x32xf32>, vector<32x96xf32>, vector<2x96xf32> -> vector<2x96xf32>
    %132 = vector.extract_strided_slice %130 {offsets = [0, 0], sizes = [2, 32], strides = [1, 1]} : vector<2x96xf32> to vector<2x32xf32>
    %133 = vector.extract_strided_slice %131 {offsets = [0, 0], sizes = [2, 32], strides = [1, 1]} : vector<2x96xf32> to vector<2x32xf32>
    %134 = arith.addf %132, %133 : vector<2x32xf32>
    %135 = arith.negf %134 : vector<2x32xf32>
    %136 = math.exp %135 : vector<2x32xf32>
    %cst_35 = arith.constant 1.000000e+00 : f32
    %137 = vector.broadcast %cst_35 : f32 to vector<2x32xf32>
    %138 = arith.addf %137, %136 : vector<2x32xf32>
    %139 = arith.divf %137, %138 : vector<2x32xf32>
    %140 = vector.extract_strided_slice %130 {offsets = [0, 32], sizes = [2, 32], strides = [1, 1]} : vector<2x96xf32> to vector<2x32xf32>
    %141 = vector.extract_strided_slice %131 {offsets = [0, 32], sizes = [2, 32], strides = [1, 1]} : vector<2x96xf32> to vector<2x32xf32>
    %142 = arith.addf %140, %141 : vector<2x32xf32>
    %143 = arith.negf %142 : vector<2x32xf32>
    %144 = math.exp %143 : vector<2x32xf32>
    %cst_36 = arith.constant 1.000000e+00 : f32
    %145 = vector.broadcast %cst_36 : f32 to vector<2x32xf32>
    %146 = arith.addf %145, %144 : vector<2x32xf32>
    %147 = arith.divf %145, %146 : vector<2x32xf32>
    %148 = vector.extract_strided_slice %130 {offsets = [0, 64], sizes = [2, 32], strides = [1, 1]} : vector<2x96xf32> to vector<2x32xf32>
    %149 = vector.extract_strided_slice %131 {offsets = [0, 64], sizes = [2, 32], strides = [1, 1]} : vector<2x96xf32> to vector<2x32xf32>
    %150 = vector.broadcast %8 : vector<1x32xf32> to vector<2x32xf32>
    %151 = arith.addf %149, %150 : vector<2x32xf32>
    %152 = arith.mulf %139, %151 : vector<2x32xf32>
    %153 = arith.addf %148, %152 : vector<2x32xf32>
    %154 = math.tanh %153 : vector<2x32xf32>
    %cst_37 = arith.constant 1.000000e+00 : f32
    %155 = vector.broadcast %cst_37 : f32 to vector<2x32xf32>
    %156 = arith.subf %155, %147 : vector<2x32xf32>
    %157 = arith.mulf %156, %154 : vector<2x32xf32>
    %158 = arith.mulf %147, %129 : vector<2x32xf32>
    %159 = arith.addf %157, %158 : vector<2x32xf32>
    %c10 = arith.constant 10 : index
    %c0_38 = arith.constant 0 : index
    %160 = vector.load %arg8[%c10, %c0_38] : memref<16x96xf32, #tpu.memory_space<vmem>>, vector<2x96xf32>
    %cst_39 = arith.constant dense<0.000000e+00> : vector<2x96xf32>
    %161 = tpu.matmul %159, %7, %cst_39 {dimension_numbers = #tpu.dot_dimension_numbers<[1], [0], [0], [1], [0, 0, 1, 1], [], []>} : vector<2x32xf32>, vector<32x96xf32>, vector<2x96xf32> -> vector<2x96xf32>
    %162 = vector.extract_strided_slice %160 {offsets = [0, 0], sizes = [2, 32], strides = [1, 1]} : vector<2x96xf32> to vector<2x32xf32>
    %163 = vector.extract_strided_slice %161 {offsets = [0, 0], sizes = [2, 32], strides = [1, 1]} : vector<2x96xf32> to vector<2x32xf32>
    %164 = arith.addf %162, %163 : vector<2x32xf32>
    %165 = arith.negf %164 : vector<2x32xf32>
    %166 = math.exp %165 : vector<2x32xf32>
    %cst_40 = arith.constant 1.000000e+00 : f32
    %167 = vector.broadcast %cst_40 : f32 to vector<2x32xf32>
    %168 = arith.addf %167, %166 : vector<2x32xf32>
    %169 = arith.divf %167, %168 : vector<2x32xf32>
    %170 = vector.extract_strided_slice %160 {offsets = [0, 32], sizes = [2, 32], strides = [1, 1]} : vector<2x96xf32> to vector<2x32xf32>
    %171 = vector.extract_strided_slice %161 {offsets = [0, 32], sizes = [2, 32], strides = [1, 1]} : vector<2x96xf32> to vector<2x32xf32>
    %172 = arith.addf %170, %171 : vector<2x32xf32>
    %173 = arith.negf %172 : vector<2x32xf32>
    %174 = math.exp %173 : vector<2x32xf32>
    %cst_41 = arith.constant 1.000000e+00 : f32
    %175 = vector.broadcast %cst_41 : f32 to vector<2x32xf32>
    %176 = arith.addf %175, %174 : vector<2x32xf32>
    %177 = arith.divf %175, %176 : vector<2x32xf32>
    %178 = vector.extract_strided_slice %160 {offsets = [0, 64], sizes = [2, 32], strides = [1, 1]} : vector<2x96xf32> to vector<2x32xf32>
    %179 = vector.extract_strided_slice %161 {offsets = [0, 64], sizes = [2, 32], strides = [1, 1]} : vector<2x96xf32> to vector<2x32xf32>
    %180 = vector.broadcast %8 : vector<1x32xf32> to vector<2x32xf32>
    %181 = arith.addf %179, %180 : vector<2x32xf32>
    %182 = arith.mulf %169, %181 : vector<2x32xf32>
    %183 = arith.addf %178, %182 : vector<2x32xf32>
    %184 = math.tanh %183 : vector<2x32xf32>
    %cst_42 = arith.constant 1.000000e+00 : f32
    %185 = vector.broadcast %cst_42 : f32 to vector<2x32xf32>
    %186 = arith.subf %185, %177 : vector<2x32xf32>
    %187 = arith.mulf %186, %184 : vector<2x32xf32>
    %188 = arith.mulf %177, %159 : vector<2x32xf32>
    %189 = arith.addf %187, %188 : vector<2x32xf32>
    %c12 = arith.constant 12 : index
    %c0_43 = arith.constant 0 : index
    %190 = vector.load %arg8[%c12, %c0_43] : memref<16x96xf32, #tpu.memory_space<vmem>>, vector<2x96xf32>
    %cst_44 = arith.constant dense<0.000000e+00> : vector<2x96xf32>
    %191 = tpu.matmul %189, %7, %cst_44 {dimension_numbers = #tpu.dot_dimension_numbers<[1], [0], [0], [1], [0, 0, 1, 1], [], []>} : vector<2x32xf32>, vector<32x96xf32>, vector<2x96xf32> -> vector<2x96xf32>
    %192 = vector.extract_strided_slice %190 {offsets = [0, 0], sizes = [2, 32], strides = [1, 1]} : vector<2x96xf32> to vector<2x32xf32>
    %193 = vector.extract_strided_slice %191 {offsets = [0, 0], sizes = [2, 32], strides = [1, 1]} : vector<2x96xf32> to vector<2x32xf32>
    %194 = arith.addf %192, %193 : vector<2x32xf32>
    %195 = arith.negf %194 : vector<2x32xf32>
    %196 = math.exp %195 : vector<2x32xf32>
    %cst_45 = arith.constant 1.000000e+00 : f32
    %197 = vector.broadcast %cst_45 : f32 to vector<2x32xf32>
    %198 = arith.addf %197, %196 : vector<2x32xf32>
    %199 = arith.divf %197, %198 : vector<2x32xf32>
    %200 = vector.extract_strided_slice %190 {offsets = [0, 32], sizes = [2, 32], strides = [1, 1]} : vector<2x96xf32> to vector<2x32xf32>
    %201 = vector.extract_strided_slice %191 {offsets = [0, 32], sizes = [2, 32], strides = [1, 1]} : vector<2x96xf32> to vector<2x32xf32>
    %202 = arith.addf %200, %201 : vector<2x32xf32>
    %203 = arith.negf %202 : vector<2x32xf32>
    %204 = math.exp %203 : vector<2x32xf32>
    %cst_46 = arith.constant 1.000000e+00 : f32
    %205 = vector.broadcast %cst_46 : f32 to vector<2x32xf32>
    %206 = arith.addf %205, %204 : vector<2x32xf32>
    %207 = arith.divf %205, %206 : vector<2x32xf32>
    %208 = vector.extract_strided_slice %190 {offsets = [0, 64], sizes = [2, 32], strides = [1, 1]} : vector<2x96xf32> to vector<2x32xf32>
    %209 = vector.extract_strided_slice %191 {offsets = [0, 64], sizes = [2, 32], strides = [1, 1]} : vector<2x96xf32> to vector<2x32xf32>
    %210 = vector.broadcast %8 : vector<1x32xf32> to vector<2x32xf32>
    %211 = arith.addf %209, %210 : vector<2x32xf32>
    %212 = arith.mulf %199, %211 : vector<2x32xf32>
    %213 = arith.addf %208, %212 : vector<2x32xf32>
    %214 = math.tanh %213 : vector<2x32xf32>
    %cst_47 = arith.constant 1.000000e+00 : f32
    %215 = vector.broadcast %cst_47 : f32 to vector<2x32xf32>
    %216 = arith.subf %215, %207 : vector<2x32xf32>
    %217 = arith.mulf %216, %214 : vector<2x32xf32>
    %218 = arith.mulf %207, %189 : vector<2x32xf32>
    %219 = arith.addf %217, %218 : vector<2x32xf32>
    %c14 = arith.constant 14 : index
    %c0_48 = arith.constant 0 : index
    %220 = vector.load %arg8[%c14, %c0_48] : memref<16x96xf32, #tpu.memory_space<vmem>>, vector<2x96xf32>
    %cst_49 = arith.constant dense<0.000000e+00> : vector<2x96xf32>
    %221 = tpu.matmul %219, %7, %cst_49 {dimension_numbers = #tpu.dot_dimension_numbers<[1], [0], [0], [1], [0, 0, 1, 1], [], []>} : vector<2x32xf32>, vector<32x96xf32>, vector<2x96xf32> -> vector<2x96xf32>
    %222 = vector.extract_strided_slice %220 {offsets = [0, 0], sizes = [2, 32], strides = [1, 1]} : vector<2x96xf32> to vector<2x32xf32>
    %223 = vector.extract_strided_slice %221 {offsets = [0, 0], sizes = [2, 32], strides = [1, 1]} : vector<2x96xf32> to vector<2x32xf32>
    %224 = arith.addf %222, %223 : vector<2x32xf32>
    %225 = arith.negf %224 : vector<2x32xf32>
    %226 = math.exp %225 : vector<2x32xf32>
    %cst_50 = arith.constant 1.000000e+00 : f32
    %227 = vector.broadcast %cst_50 : f32 to vector<2x32xf32>
    %228 = arith.addf %227, %226 : vector<2x32xf32>
    %229 = arith.divf %227, %228 : vector<2x32xf32>
    %230 = vector.extract_strided_slice %220 {offsets = [0, 32], sizes = [2, 32], strides = [1, 1]} : vector<2x96xf32> to vector<2x32xf32>
    %231 = vector.extract_strided_slice %221 {offsets = [0, 32], sizes = [2, 32], strides = [1, 1]} : vector<2x96xf32> to vector<2x32xf32>
    %232 = arith.addf %230, %231 : vector<2x32xf32>
    %233 = arith.negf %232 : vector<2x32xf32>
    %234 = math.exp %233 : vector<2x32xf32>
    %cst_51 = arith.constant 1.000000e+00 : f32
    %235 = vector.broadcast %cst_51 : f32 to vector<2x32xf32>
    %236 = arith.addf %235, %234 : vector<2x32xf32>
    %237 = arith.divf %235, %236 : vector<2x32xf32>
    %238 = vector.extract_strided_slice %220 {offsets = [0, 64], sizes = [2, 32], strides = [1, 1]} : vector<2x96xf32> to vector<2x32xf32>
    %239 = vector.extract_strided_slice %221 {offsets = [0, 64], sizes = [2, 32], strides = [1, 1]} : vector<2x96xf32> to vector<2x32xf32>
    %240 = vector.broadcast %8 : vector<1x32xf32> to vector<2x32xf32>
    %241 = arith.addf %239, %240 : vector<2x32xf32>
    %242 = arith.mulf %229, %241 : vector<2x32xf32>
    %243 = arith.addf %238, %242 : vector<2x32xf32>
    %244 = math.tanh %243 : vector<2x32xf32>
    %cst_52 = arith.constant 1.000000e+00 : f32
    %245 = vector.broadcast %cst_52 : f32 to vector<2x32xf32>
    %246 = arith.subf %245, %237 : vector<2x32xf32>
    %247 = arith.mulf %246, %244 : vector<2x32xf32>
    %248 = arith.mulf %237, %219 : vector<2x32xf32>
    %249 = arith.addf %247, %248 : vector<2x32xf32>
    %c0_53 = arith.constant 0 : index
    %c0_54 = arith.constant 0 : index
    %250 = vector.load %arg5[%c0_53, %c0_54] : memref<32x8xf32, #tpu.memory_space<vmem>>, vector<32x8xf32>
    %cst_55 = arith.constant dense<0.000000e+00> : vector<2x8xf32>
    %251 = tpu.matmul %249, %250, %cst_55 {dimension_numbers = #tpu.dot_dimension_numbers<[1], [0], [0], [1], [0, 0, 1, 1], [], []>} : vector<2x32xf32>, vector<32x8xf32>, vector<2x8xf32> -> vector<2x8xf32>
    %c0_56 = arith.constant 0 : index
    %c0_57 = arith.constant 0 : index
    %252 = vector.load %arg6[%c0_56, %c0_57] : memref<1x8xf32, #tpu.memory_space<vmem>>, vector<1x8xf32>
    %253 = vector.broadcast %252 : vector<1x8xf32> to vector<2x8xf32>
    %254 = arith.addf %251, %253 : vector<2x8xf32>
    %c0_58 = arith.constant 0 : index
    %c0_59 = arith.constant 0 : index
    %255 = vector.load %arg7[%c0_58, %c0_59] : memref<2x8xf32, #tpu.memory_space<vmem>>, vector<2x8xf32>
    tpu.vector_store %arg7[%c0_58, %c0_59], %254 {strides = array<i32>} : memref<2x8xf32, #tpu.memory_space<vmem>>, vector<2x8xf32>,
    return
  }
}

</mosaic_0001>

<llo_original>
// kernel: tpu_custom_call.1
$region0: #{tpu_custom_call.1}
  #allocation0 [shape = 'u32[]', space=smem, size = 0x4, offset = 0x4, fixed_abs, tag = 'smem constant byte address 0x4 - core index']
  #allocation1 [shape = 'u32[144,128]{1,0:T(1,128)}', space=vmem, size = 0x12000, scoped, tag = 'internal scratch']
  #allocation2 [shape = 'f32[16,96]{1,0:T(8,128)}', space=vmem, size = 0x2000, scoped, tag = 'scratch operand']
  %s0 = inlined_call_operand.vmem [shape: f32[16,4], index: 0, kind: input, shape index: {}]
  %s1 = inlined_call_operand.vmem [shape: f32[4,96], index: 1, kind: input, shape index: {}]
  %s2 = inlined_call_operand.vmem [shape: f32[32,96], index: 2, kind: input, shape index: {}]
  %s3 = inlined_call_operand.vmem [shape: f32[1,96], index: 3, kind: input, shape index: {}]
  %s4 = inlined_call_operand.vmem [shape: f32[1,32], index: 4, kind: input, shape index: {}]
  %s5 = inlined_call_operand.vmem [shape: f32[32,8], index: 5, kind: input, shape index: {}]
  %s6 = inlined_call_operand.vmem [shape: f32[1,8], index: 6, kind: input, shape index: {}]
  %s7 = inlined_call_operand.hbm [shape: f32[2,8], index: 7, kind: output, shape index: {}]
  %s8 = sld [smem:[#allocation0]]
  $region38: #{tpu_custom_call.1} parent=0
    _
  %s10 = ssub.s32 1, %s8
  %s11 = scalar_select 0, %s10, %s8
  $region1: #{tpu_custom_call.1} parent=0
    #allocation3 [shape = 'u8[1024]{0}', space=vmem, size = 0x400, scoped, tag = 'output window, operand 0, single buffered']
    #allocation4 [shape = 's32[1]{0}', space=sflag, size = 0x4, scoped, tag = 'scoped memory for tpu_custom_call.1']
    %12 = vsyncpa [#allocation4], 0
    // Predicated region
    $region2: #{tpu_custom_call.1} parent=1 // pred_check
      _
    $region3: #{tpu_custom_call.1} parent=1 // pred_check_branch
      %14 = sbr.rel (0) target = $region5
    $region4: #{tpu_custom_call.1} parent=1 // pred_region
      _
    $region5: #{tpu_custom_call.1} parent=1 // pred_fallthru
      _
    // Predicated region
    $region6: #{tpu_custom_call.1} parent=1 // pred_check
      _
    $region7: #{tpu_custom_call.1} parent=1 // pred_check_branch
      %16 = sbr.rel (0) target = $region9
    $region8: #{tpu_custom_call.1} parent=1 // pred_region
      _
    $region9: #{tpu_custom_call.1} parent=1 // pred_fallthru
      _
    // Predicated region
    $region10: #{tpu_custom_call.1} parent=1 // pred_check
      _
    $region11: #{tpu_custom_call.1} parent=1 // pred_check_branch
      %18 = sbr.rel (0) target = $region13
    $region12: #{tpu_custom_call.1} parent=1 // pred_region
      _
    $region13: #{tpu_custom_call.1} parent=1 // pred_fallthru
      _
    // Predicated region
    $region14: #{tpu_custom_call.1} parent=1 // pred_check
      _
    $region15: #{tpu_custom_call.1} parent=1 // pred_check_branch
      %20 = sbr.rel (0) target = $region17
    $region16: #{tpu_custom_call.1} parent=1 // pred_region
      _
    $region17: #{tpu_custom_call.1} parent=1 // pred_fallthru
      _
    // Predicated region
    $region18: #{tpu_custom_call.1} parent=1 // pred_check
      _
    $region19: #{tpu_custom_call.1} parent=1 // pred_check_branch
      %22 = sbr.rel (0) target = $region21
    $region20: #{tpu_custom_call.1} parent=1 // pred_region
      _
    $region21: #{tpu_custom_call.1} parent=1 // pred_fallthru
      _
    // Predicated region
    $region22: #{tpu_custom_call.1} parent=1 // pred_check
      _
    $region23: #{tpu_custom_call.1} parent=1 // pred_check_branch
      %24 = sbr.rel (0) target = $region25
    $region24: #{tpu_custom_call.1} parent=1 // pred_region
      _
    $region25: #{tpu_custom_call.1} parent=1 // pred_fallthru
      _
    // Predicated region
    $region26: #{tpu_custom_call.1} parent=1 // pred_check
      _
    $region27: #{tpu_custom_call.1} parent=1 // pred_check_branch
      %26 = sbr.rel (0) target = $region29
    $region28: #{tpu_custom_call.1} parent=1 // pred_region
      _
    $region29: #{tpu_custom_call.1} parent=1 // pred_fallthru
      _
    %v27 = vld [vmem:[%s0] sm:$0xff]
    %v28 = vld [vmem:[%s0 + $0x8] sm:$0xff]
    %v29 = vld [vmem:[%s1] sm:$0xf]
    %v30 = vld [vmem:[%s3] sm:$0x1]
    %v32 = vlaneseq
    %v33 = vshrl.u32 %v32, 7
    %v34 = vsub.s32 0, %v33
    %v35 = vrot.slane %v30, %v34
    %vm37 = vcmask 31744
    %v39 = vsel %vm37, %v27, 0
    %v42 = vsel %vm37, %v28, 0
    %vm44 = vcmask 1043456
    %v46 = vsel %vm44, %v29, 0
    %48 = vmatprep.subr.mxu0 0.0
    %49 = vmatpush1.msra.mxu0 %v46
    %50 = vmatprep.subr.mxu0 0.0
    %51 = vmatpush1.msra.mxu0 0.0
    %52 = vmatprep.subr.mxu0 0.0
    %53 = vmatpush1.msra.mxu0 0.0
    %54 = vmatprep.subr.mxu0 0.0
    %55 = vmatpush1.msra.mxu0 0.0
    %56 = vmatprep.subr.mxu0 0.0
    %57 = vmatpush1.msra.mxu0 0.0
    %58 = vmatprep.subr.mxu0 0.0
    %59 = vmatpush1.msra.mxu0 0.0
    %60 = vmatprep.subr.mxu0 0.0
    %61 = vmatpush1.msra.mxu0 0.0
    %62 = vmatprep.subr.mxu0 0.0
    %63 = vmatpush1.msra.mxu0 0.0
    %64 = vmatprep.subr.mxu0 0.0
    %65 = vmatpush1.msra.mxu0 0.0
    %66 = vmatprep.subr.mxu0 0.0
    %67 = vmatpush1.msra.mxu0 0.0
    %68 = vmatprep.subr.mxu0 0.0
    %69 = vmatpush1.msra.mxu0 0.0
    %70 = vmatprep.subr.mxu0 0.0
    %71 = vmatpush1.msra.mxu0 0.0
    %72 = vmatprep.subr.mxu0 0.0
    %73 = vmatpush1.msra.mxu0 0.0
    %74 = vmatprep.subr.mxu0 0.0
    %75 = vmatpush1.msra.mxu0 0.0
    %76 = vmatprep.subr.mxu0 0.0
    %77 = vmatpush1.msra.mxu0 0.0
    %78 = vmatprep.subr.mxu0 0.0
    %79 = vmatpush1.msra.mxu0 0.0
    %80 = vmatprep.subr.mxu0 0.0
    %81 = vmatpush1.msra.mxu0 0.0
    %82 = vmatprep.subr.mxu0 0.0
    %83 = vmatpush1.msra.mxu0 0.0
    %84 = vmatprep.subr.mxu0 0.0
    %85 = vmatpush1.msra.mxu0 0.0
    %86 = vmatprep.subr.mxu0 0.0
    %87 = vmatpush1.msra.mxu0 0.0
    %88 = vmatprep.subr.mxu0 0.0
    %89 = vmatpush1.msra.mxu0 0.0
    %90 = vmatprep.subr.mxu0 0.0
    %91 = vmatpush1.msra.mxu0 0.0
    %92 = vmatprep.subr.mxu0 0.0
    %93 = vmatpush1.msra.mxu0 0.0
    %94 = vmatprep.subr.mxu0 0.0
    %95 = vmatpush1.msra.mxu0 0.0
    %96 = vmatprep.subr.mxu0 0.0
    %97 = vmatpush1.msra.mxu0 0.0
    %98 = vmatprep.subr.mxu0 0.0
    %99 = vmatpush1.msra.mxu0 0.0
    %100 = vmatprep.subr.mxu0 0.0
    %101 = vmatpush1.msra.mxu0 0.0
    %102 = vmatprep.subr.mxu0 0.0
    %103 = vmatpush1.msra.mxu0 0.0
    %104 = vmatprep.subr.mxu0 0.0
    %105 = vmatpush1.msra.mxu0 0.0
    %106 = vmatprep.subr.mxu0 0.0
    %107 = vmatpush1.msra.mxu0 0.0
    %108 = vmatprep.subr.mxu0 0.0
    %109 = vmatpush1.msra.mxu0 0.0
    %110 = vmatprep.subr.mxu0 0.0
    %111 = vmatpush1.msra.mxu0 0.0
    %112 = vmatprep.mubr.f32.mxu0 0.0
    %113 = vmatmul.mubr.f32.gmra.mrb[0].mxu0 %v39
    %v114 = vpop.f32.mrb[0].mxu0
    %v115 = vadd.f32 %v35, %v114
    %v116 = vpop.f32.mrb[0].mxu0
    %117 = vmatprep.mubr.f32.mxu0 0.0
    %118 = vmatmul.mubr.f32.gmra.mrb[0].mxu0 %v42
    %v119 = vpop.f32.mrb[0].mxu0
    %v120 = vadd.f32 %v35, %v119
    %v121 = vpop.f32.mrb[0].mxu0
    %122 = vdwg.mxu0
    %vm123 = vcmask 785408
    %124 = vst.msk [vmem:[#allocation2] sm:$0xff] %vm123, %v115
    %125 = vst.msk [vmem:[#allocation2 + $0x8] sm:$0xff] %vm123, %v120
    %v126 = vld [vmem:[%s2] sm:$0xff]
    %v127 = vld [vmem:[%s2 + $0x8] sm:$0xff]
    %v128 = vld [vmem:[%s2 + $0x10] sm:$0xff]
    %v129 = vld [vmem:[%s2 + $0x18] sm:$0xff]
    %v130 = vld [vmem:[%s4] sm:$0x1]
    %v131 = vld [vmem:[#allocation2] sm:$0x3]
    %vm132 = vcmask 261120
    %v134 = vsel %vm132, 0.0, 0
    %136 = vmatprep.subr.mxu0 0.0
    %137 = vmatpush1.msra.mxu0 %v126
    %138 = vmatprep.subr.mxu0 0.0
    %139 = vmatpush1.msra.mxu0 %v127
    %140 = vmatprep.subr.mxu0 0.0
    %141 = vmatpush1.msra.mxu0 %v128
    %142 = vmatprep.subr.mxu0 0.0
    %143 = vmatpush1.msra.mxu0 %v129
    %144 = vmatprep.subr.mxu0 0.0
    %145 = vmatpush1.msra.mxu0 0.0
    %146 = vmatprep.subr.mxu0 0.0
    %147 = vmatpush1.msra.mxu0 0.0
    %148 = vmatprep.subr.mxu0 0.0
    %149 = vmatpush1.msra.mxu0 0.0
    %150 = vmatprep.subr.mxu0 0.0
    %151 = vmatpush1.msra.mxu0 0.0
    %152 = vmatprep.subr.mxu0 0.0
    %153 = vmatpush1.msra.mxu0 0.0
    %154 = vmatprep.subr.mxu0 0.0
    %155 = vmatpush1.msra.mxu0 0.0
    %156 = vmatprep.subr.mxu0 0.0
    %157 = vmatpush1.msra.mxu0 0.0
    %158 = vmatprep.subr.mxu0 0.0
    %159 = vmatpush1.msra.mxu0 0.0
    %160 = vmatprep.subr.mxu0 0.0
    %161 = vmatpush1.msra.mxu0 0.0
    %162 = vmatprep.subr.mxu0 0.0
    %163 = vmatpush1.msra.mxu0 0.0
    %164 = vmatprep.subr.mxu0 0.0
    %165 = vmatpush1.msra.mxu0 0.0
    %166 = vmatprep.subr.mxu0 0.0
    %167 = vmatpush1.msra.mxu0 0.0
    %168 = vmatprep.subr.mxu0 0.0
    %169 = vmatpush1.msra.mxu0 0.0
    %170 = vmatprep.subr.mxu0 0.0
    %171 = vmatpush1.msra.mxu0 0.0
    %172 = vmatprep.subr.mxu0 0.0
    %173 = vmatpush1.msra.mxu0 0.0
    %174 = vmatprep.subr.mxu0 0.0
    %175 = vmatpush1.msra.mxu0 0.0
    %176 = vmatprep.subr.mxu0 0.0
    %177 = vmatpush1.msra.mxu0 0.0
    %178 = vmatprep.subr.mxu0 0.0
    %179 = vmatpush1.msra.mxu0 0.0
    %180 = vmatprep.subr.mxu0 0.0
    %181 = vmatpush1.msra.mxu0 0.0
    %182 = vmatprep.subr.mxu0 0.0
    %183 = vmatpush1.msra.mxu0 0.0
    %184 = vmatprep.subr.mxu0 0.0
    %185 = vmatpush1.msra.mxu0 0.0
    %186 = vmatprep.subr.mxu0 0.0
    %187 = vmatpush1.msra.mxu0 0.0
    %188 = vmatprep.subr.mxu0 0.0
    %189 = vmatpush1.msra.mxu0 0.0
    %190 = vmatprep.subr.mxu0 0.0
    %191 = vmatpush1.msra.mxu0 0.0
    %192 = vmatprep.subr.mxu0 0.0
    %193 = vmatpush1.msra.mxu0 0.0
    %194 = vmatprep.subr.mxu0 0.0
    %195 = vmatpush1.msra.mxu0 0.0
    %196 = vmatprep.subr.mxu0 0.0
    %197 = vmatpush1.msra.mxu0 0.0
    %198 = vmatprep.subr.mxu0 0.0
    %199 = vmatpush1.msra.mxu0 0.0
    %200 = vmatprep.mubr.f32.mxu0 0.0
    %201 = vmatmul.mubr.f32.gmra.mrb[0].mxu0 %v134
    %v202 = vpop.f32.mrb[0].mxu0
    %v203 = vadd.f32 0.0, %v202
    %v204 = vpop.f32.mrb[0].mxu0
    %205 = vdwg.mxu0
    %v206 = vadd.f32 %v131, %v203
    %v207 = vxor.u32 %v206, 2147483648
    %v208 = vmul.f32 %v207, 1.442695
    %v209 = vpow.pop %v208
    %v210 = vadd.f32 %v209, 1.0
    %v211 = vrcp.pop %v210
    %v212 = vmul.f32 1.0, %v211
    %v214 = vlaneseq
    %v215 = vshrl.u32 %v214, 7
    %v216 = vsub.s32 0, %v215
    %v217 = vrot.slane %v130, %v216
    %218 = vrot.lane.b32.xlu0 %v217, 64
    %v219 = vpop.permute.xlu0 %218
    %v221 = vadd.f32 %v203, %v219
    %223 = vrot.lane.b32.xlu0 %v221, 64
    %v224 = vpop.permute.xlu0 %223
    %v226 = vmul.f32 %v212, %v224
    %228 = vrot.lane.b32.xlu0 %v226, 64
    %v229 = vpop.permute.xlu0 %228
    %v231 = vadd.f32 %v131, %v229
    %v232 = vtanh.pop %v231
    %v233 = vsub.f32 1.0, %v212
    %235 = vrot.lane.b32.xlu0 %v232, 96
    %v236 = vpop.permute.xlu0 %235
    %v238 = vmul.f32 %v233, %v236
    %v239 = vmul.f32 %v212, 0.0
    %v240 = vadd.f32 %v238, %v239
    %v241 = vld [vmem:[#allocation2 + $0x2] sm:$0x3]
    %243 = vrot.lane.b32.xlu0 %v240, 96
    %v244 = vpop.permute.xlu0 %243
    %v245 = vsel %vm132, %v244, 0
    %247 = vmatprep.subr.mxu0 0.0
    %248 = vmatpush1.msra.mxu0 %v126
    %249 = vmatprep.subr.mxu0 0.0
    %250 = vmatpush1.msra.mxu0 %v127
    %251 = vmatprep.subr.mxu0 0.0
    %252 = vmatpush1.msra.mxu0 %v128
    %253 = vmatprep.subr.mxu0 0.0
    %254 = vmatpush1.msra.mxu0 %v129
    %255 = vmatprep.subr.mxu0 0.0
    %256 = vmatpush1.msra.mxu0 0.0
    %257 = vmatprep.subr.mxu0 0.0
    %258 = vmatpush1.msra.mxu0 0.0
    %259 = vmatprep.subr.mxu0 0.0
    %260 = vmatpush1.msra.mxu0 0.0
    %261 = vmatprep.subr.mxu0 0.0
    %262 = vmatpush1.msra.mxu0 0.0
    %263 = vmatprep.subr.mxu0 0.0
    %264 = vmatpush1.msra.mxu0 0.0
    %265 = vmatprep.subr.mxu0 0.0
    %266 = vmatpush1.msra.mxu0 0.0
    %267 = vmatprep.subr.mxu0 0.0
    %268 = vmatpush1.msra.mxu0 0.0
    %269 = vmatprep.subr.mxu0 0.0
    %270 = vmatpush1.msra.mxu0 0.0
    %271 = vmatprep.subr.mxu0 0.0
    %272 = vmatpush1.msra.mxu0 0.0
    %273 = vmatprep.subr.mxu0 0.0
    %274 = vmatpush1.msra.mxu0 0.0
    %275 = vmatprep.subr.mxu0 0.0
    %276 = vmatpush1.msra.mxu0 0.0
    %277 = vmatprep.subr.mxu0 0.0
    %278 = vmatpush1.msra.mxu0 0.0
    %279 = vmatprep.subr.mxu0 0.0
    %280 = vmatpush1.msra.mxu0 0.0
    %281 = vmatprep.subr.mxu0 0.0
    %282 = vmatpush1.msra.mxu0 0.0
    %283 = vmatprep.subr.mxu0 0.0
    %284 = vmatpush1.msra.mxu0 0.0
    %285 = vmatprep.subr.mxu0 0.0
    %286 = vmatpush1.msra.mxu0 0.0
    %287 = vmatprep.subr.mxu0 0.0
    %288 = vmatpush1.msra.mxu0 0.0
    %289 = vmatprep.subr.mxu0 0.0
    %290 = vmatpush1.msra.mxu0 0.0
    %291 = vmatprep.subr.mxu0 0.0
    %292 = vmatpush1.msra.mxu0 0.0
    %293 = vmatprep.subr.mxu0 0.0
    %294 = vmatpush1.msra.mxu0 0.0
    %295 = vmatprep.subr.mxu0 0.0
    %296 = vmatpush1.msra.mxu0 0.0
    %297 = vmatprep.subr.mxu0 0.0
    %298 = vmatpush1.msra.mxu0 0.0
    %299 = vmatprep.subr.mxu0 0.0
    %300 = vmatpush1.msra.mxu0 0.0
    %301 = vmatprep.subr.mxu0 0.0
    %302 = vmatpush1.msra.mxu0 0.0
    %303 = vmatprep.subr.mxu0 0.0
    %304 = vmatpush1.msra.mxu0 0.0
    %305 = vmatprep.subr.mxu0 0.0
    %306 = vmatpush1.msra.mxu0 0.0
    %307 = vmatprep.subr.mxu0 0.0
    %308 = vmatpush1.msra.mxu0 0.0
    %309 = vmatprep.subr.mxu0 0.0
    %310 = vmatpush1.msra.mxu0 0.0
    %311 = vmatprep.mubr.f32.mxu0 0.0
    %312 = vmatmul.mubr.f32.gmra.mrb[0].mxu0 %v245
    %v313 = vpop.f32.mrb[0].mxu0
    %v314 = vadd.f32 0.0, %v313
    %v315 = vpop.f32.mrb[0].mxu0
    %316 = vdwg.mxu0
    %v317 = vadd.f32 %v241, %v314
    %v318 = vxor.u32 %v317, 2147483648
    %v319 = vmul.f32 %v318, 1.442695
    %v320 = vpow.pop %v319
    %v321 = vadd.f32 %v320, 1.0
    %v322 = vrcp.pop %v321
    %v323 = vmul.f32 1.0, %v322
    %v324 = vadd.f32 %v314, %v219
    %326 = vrot.lane.b32.xlu0 %v324, 64
    %v327 = vpop.permute.xlu0 %326
    %v329 = vmul.f32 %v323, %v327
    %331 = vrot.lane.b32.xlu0 %v329, 64
    %v332 = vpop.permute.xlu0 %331
    %v334 = vadd.f32 %v241, %v332
    %v335 = vtanh.pop %v334
    %v336 = vsub.f32 1.0, %v323
    %338 = vrot.lane.b32.xlu0 %v335, 96
    %v339 = vpop.permute.xlu0 %338
    %v341 = vmul.f32 %v336, %v339
    %v342 = vmul.f32 %v323, %v240
    %v343 = vadd.f32 %v341, %v342
    %v344 = vld [vmem:[#allocation2 + $0x4] sm:$0x3]
    %346 = vrot.lane.b32.xlu0 %v343, 96
    %v347 = vpop.permute.xlu0 %346
    %v348 = vsel %vm132, %v347, 0
    %350 = vmatprep.subr.mxu0 0.0
    %351 = vmatpush1.msra.mxu0 %v126
    %352 = vmatprep.subr.mxu0 0.0
    %353 = vmatpush1.msra.mxu0 %v127
    %354 = vmatprep.subr.mxu0 0.0
    %355 = vmatpush1.msra.mxu0 %v128
    %356 = vmatprep.subr.mxu0 0.0
    %357 = vmatpush1.msra.mxu0 %v129
    %358 = vmatprep.subr.mxu0 0.0
    %359 = vmatpush1.msra.mxu0 0.0
    %360 = vmatprep.subr.mxu0 0.0
    %361 = vmatpush1.msra.mxu0 0.0
    %362 = vmatprep.subr.mxu0 0.0
    %363 = vmatpush1.msra.mxu0 0.0
    %364 = vmatprep.subr.mxu0 0.0
    %365 = vmatpush1.msra.mxu0 0.0
    %366 = vmatprep.subr.mxu0 0.0
    %367 = vmatpush1.msra.mxu0 0.0
    %368 = vmatprep.subr.mxu0 0.0
    %369 = vmatpush1.msra.mxu0 0.0
    %370 = vmatprep.subr.mxu0 0.0
    %371 = vmatpush1.msra.mxu0 0.0
    %372 = vmatprep.subr.mxu0 0.0
    %373 = vmatpush1.msra.mxu0 0.0
    %374 = vmatprep.subr.mxu0 0.0
    %375 = vmatpush1.msra.mxu0 0.0
    %376 = vmatprep.subr.mxu0 0.0
    %377 = vmatpush1.msra.mxu0 0.0
    %378 = vmatprep.subr.mxu0 0.0
    %379 = vmatpush1.msra.mxu0 0.0
    %380 = vmatprep.subr.mxu0 0.0
    %381 = vmatpush1.msra.mxu0 0.0
    %382 = vmatprep.subr.mxu0 0.0
    %383 = vmatpush1.msra.mxu0 0.0
    %384 = vmatprep.subr.mxu0 0.0
    %385 = vmatpush1.msra.mxu0 0.0
    %386 = vmatprep.subr.mxu0 0.0
    %387 = vmatpush1.msra.mxu0 0.0
    %388 = vmatprep.subr.mxu0 0.0
    %389 = vmatpush1.msra.mxu0 0.0
    %390 = vmatprep.subr.mxu0 0.0
    %391 = vmatpush1.msra.mxu0 0.0
    %392 = vmatprep.subr.mxu0 0.0
    %393 = vmatpush1.msra.mxu0 0.0
    %394 = vmatprep.subr.mxu0 0.0
    %395 = vmatpush1.msra.mxu0 0.0
    %396 = vmatprep.subr.mxu0 0.0
    %397 = vmatpush1.msra.mxu0 0.0
    %398 = vmatprep.subr.mxu0 0.0
    %399 = vmatpush1.msra.mxu0 0.0
    %400 = vmatprep.subr.mxu0 0.0
    %401 = vmatpush1.msra.mxu0 0.0
    %402 = vmatprep.subr.mxu0 0.0
    %403 = vmatpush1.msra.mxu0 0.0
    %404 = vmatprep.subr.mxu0 0.0
    %405 = vmatpush1.msra.mxu0 0.0
    %406 = vmatprep.subr.mxu0 0.0
    %407 = vmatpush1.msra.mxu0 0.0
    %408 = vmatprep.subr.mxu0 0.0
    %409 = vmatpush1.msra.mxu0 0.0
    %410 = vmatprep.subr.mxu0 0.0
    %411 = vmatpush1.msra.mxu0 0.0
    %412 = vmatprep.subr.mxu0 0.0
    %413 = vmatpush1.msra.mxu0 0.0
    %414 = vmatprep.mubr.f32.mxu0 0.0
    %415 = vmatmul.mubr.f32.gmra.mrb[0].mxu0 %v348
    %v416 = vpop.f32.mrb[0].mxu0
    %v417 = vadd.f32 0.0, %v416
    %v418 = vpop.f32.mrb[0].mxu0
    %419 = vdwg.mxu0
    %v420 = vadd.f32 %v344, %v417
    %v421 = vxor.u32 %v420, 2147483648
    %v422 = vmul.f32 %v421, 1.442695
    %v423 = vpow.pop %v422
    %v424 = vadd.f32 %v423, 1.0
    %v425 = vrcp.pop %v424
    %v426 = vmul.f32 1.0, %v425
    %v427 = vadd.f32 %v417, %v219
    %429 = vrot.lane.b32.xlu0 %v427, 64
    %v430 = vpop.permute.xlu0 %429
    %v432 = vmul.f32 %v426, %v430
    %434 = vrot.lane.b32.xlu0 %v432, 64
    %v435 = vpop.permute.xlu0 %434
    %v437 = vadd.f32 %v344, %v435
    %v438 = vtanh.pop %v437
    %v439 = vsub.f32 1.0, %v426
    %441 = vrot.lane.b32.xlu0 %v438, 96
    %v442 = vpop.permute.xlu0 %441
    %v444 = vmul.f32 %v439, %v442
    %v445 = vmul.f32 %v426, %v343
    %v446 = vadd.f32 %v444, %v445
    %v447 = vld [vmem:[#allocation2 + $0x6] sm:$0x3]
    %449 = vrot.lane.b32.xlu0 %v446, 96
    %v450 = vpop.permute.xlu0 %449
    %v451 = vsel %vm132, %v450, 0
    %453 = vmatprep.subr.mxu0 0.0
    %454 = vmatpush1.msra.mxu0 %v126
    %455 = vmatprep.subr.mxu0 0.0
    %456 = vmatpush1.msra.mxu0 %v127
    %457 = vmatprep.subr.mxu0 0.0
    %458 = vmatpush1.msra.mxu0 %v128
    %459 = vmatprep.subr.mxu0 0.0
    %460 = vmatpush1.msra.mxu0 %v129
    %461 = vmatprep.subr.mxu0 0.0
    %462 = vmatpush1.msra.mxu0 0.0
    %463 = vmatprep.subr.mxu0 0.0
    %464 = vmatpush1.msra.mxu0 0.0
    %465 = vmatprep.subr.mxu0 0.0
    %466 = vmatpush1.msra.mxu0 0.0
    %467 = vmatprep.subr.mxu0 0.0
    %468 = vmatpush1.msra.mxu0 0.0
    %469 = vmatprep.subr.mxu0 0.0
    %470 = vmatpush1.msra.mxu0 0.0
    %471 = vmatprep.subr.mxu0 0.0
    %472 = vmatpush1.msra.mxu0 0.0
    %473 = vmatprep.subr.mxu0 0.0
    %474 = vmatpush1.msra.mxu0 0.0
    %475 = vmatprep.subr.mxu0 0.0
    %476 = vmatpush1.msra.mxu0 0.0
    %477 = vmatprep.subr.mxu0 0.0
    %478 = vmatpush1.msra.mxu0 0.0
    %479 = vmatprep.subr.mxu0 0.0
    %480 = vmatpush1.msra.mxu0 0.0
    %481 = vmatprep.subr.mxu0 0.0
    %482 = vmatpush1.msra.mxu0 0.0
    %483 = vmatprep.subr.mxu0 0.0
    %484 = vmatpush1.msra.mxu0 0.0
    %485 = vmatprep.subr.mxu0 0.0
    %486 = vmatpush1.msra.mxu0 0.0
    %487 = vmatprep.subr.mxu0 0.0
    %488 = vmatpush1.msra.mxu0 0.0
    %489 = vmatprep.subr.mxu0 0.0
    %490 = vmatpush1.msra.mxu0 0.0
    %491 = vmatprep.subr.mxu0 0.0
    %492 = vmatpush1.msra.mxu0 0.0
    %493 = vmatprep.subr.mxu0 0.0
    %494 = vmatpush1.msra.mxu0 0.0
    %495 = vmatprep.subr.mxu0 0.0
    %496 = vmatpush1.msra.mxu0 0.0
    %497 = vmatprep.subr.mxu0 0.0
    %498 = vmatpush1.msra.mxu0 0.0
    %499 = vmatprep.subr.mxu0 0.0
    %500 = vmatpush1.msra.mxu0 0.0
    %501 = vmatprep.subr.mxu0 0.0
    %502 = vmatpush1.msra.mxu0 0.0
    %503 = vmatprep.subr.mxu0 0.0
    %504 = vmatpush1.msra.mxu0 0.0
    %505 = vmatprep.subr.mxu0 0.0
    %506 = vmatpush1.msra.mxu0 0.0
    %507 = vmatprep.subr.mxu0 0.0
    %508 = vmatpush1.msra.mxu0 0.0
    %509 = vmatprep.subr.mxu0 0.0
    %510 = vmatpush1.msra.mxu0 0.0
    %511 = vmatprep.subr.mxu0 0.0
    %512 = vmatpush1.msra.mxu0 0.0
    %513 = vmatprep.subr.mxu0 0.0
    %514 = vmatpush1.msra.mxu0 0.0
    %515 = vmatprep.subr.mxu0 0.0
    %516 = vmatpush1.msra.mxu0 0.0
    %517 = vmatprep.mubr.f32.mxu0 0.0
    %518 = vmatmul.mubr.f32.gmra.mrb[0].mxu0 %v451
    %v519 = vpop.f32.mrb[0].mxu0
    %v520 = vadd.f32 0.0, %v519
    %v521 = vpop.f32.mrb[0].mxu0
    %522 = vdwg.mxu0
    %v523 = vadd.f32 %v447, %v520
    %v524 = vxor.u32 %v523, 2147483648
    %v525 = vmul.f32 %v524, 1.442695
    %v526 = vpow.pop %v525
    %v527 = vadd.f32 %v526, 1.0
    %v528 = vrcp.pop %v527
    %v529 = vmul.f32 1.0, %v528
    %v530 = vadd.f32 %v520, %v219
    %532 = vrot.lane.b32.xlu0 %v530, 64
    %v533 = vpop.permute.xlu0 %532
    %v535 = vmul.f32 %v529, %v533
    %537 = vrot.lane.b32.xlu0 %v535, 64
    %v538 = vpop.permute.xlu0 %537
    %v540 = vadd.f32 %v447, %v538
    %v541 = vtanh.pop %v540
    %v542 = vsub.f32 1.0, %v529
    %544 = vrot.lane.b32.xlu0 %v541, 96
    %v545 = vpop.permute.xlu0 %544
    %v547 = vmul.f32 %v542, %v545
    %v548 = vmul.f32 %v529, %v446
    %v549 = vadd.f32 %v547, %v548
    %v550 = vld [vmem:[#allocation2 + $0x8] sm:$0x3]
    %552 = vrot.lane.b32.xlu0 %v549, 96
    %v553 = vpop.permute.xlu0 %552
    %v554 = vsel %vm132, %v553, 0
    %556 = vmatprep.subr.mxu0 0.0
    %557 = vmatpush1.msra.mxu0 %v126
    %558 = vmatprep.subr.mxu0 0.0
    %559 = vmatpush1.msra.mxu0 %v127
    %560 = vmatprep.subr.mxu0 0.0
    %561 = vmatpush1.msra.mxu0 %v128
    %562 = vmatprep.subr.mxu0 0.0
    %563 = vmatpush1.msra.mxu0 %v129
    %564 = vmatprep.subr.mxu0 0.0
    %565 = vmatpush1.msra.mxu0 0.0
    %566 = vmatprep.subr.mxu0 0.0
    %567 = vmatpush1.msra.mxu0 0.0
    %568 = vmatprep.subr.mxu0 0.0
    %569 = vmatpush1.msra.mxu0 0.0
    %570 = vmatprep.subr.mxu0 0.0
    %571 = vmatpush1.msra.mxu0 0.0
    %572 = vmatprep.subr.mxu0 0.0
    %573 = vmatpush1.msra.mxu0 0.0
    %574 = vmatprep.subr.mxu0 0.0
    %575 = vmatpush1.msra.mxu0 0.0
    %576 = vmatprep.subr.mxu0 0.0
    %577 = vmatpush1.msra.mxu0 0.0
    %578 = vmatprep.subr.mxu0 0.0
    %579 = vmatpush1.msra.mxu0 0.0
    %580 = vmatprep.subr.mxu0 0.0
    %581 = vmatpush1.msra.mxu0 0.0
    %582 = vmatprep.subr.mxu0 0.0
    %583 = vmatpush1.msra.mxu0 0.0
    %584 = vmatprep.subr.mxu0 0.0
    %585 = vmatpush1.msra.mxu0 0.0
    %586 = vmatprep.subr.mxu0 0.0
    %587 = vmatpush1.msra.mxu0 0.0
    %588 = vmatprep.subr.mxu0 0.0
    %589 = vmatpush1.msra.mxu0 0.0
    %590 = vmatprep.subr.mxu0 0.0
    %591 = vmatpush1.msra.mxu0 0.0
    %592 = vmatprep.subr.mxu0 0.0
    %593 = vmatpush1.msra.mxu0 0.0
    %594 = vmatprep.subr.mxu0 0.0
    %595 = vmatpush1.msra.mxu0 0.0
    %596 = vmatprep.subr.mxu0 0.0
    %597 = vmatpush1.msra.mxu0 0.0
    %598 = vmatprep.subr.mxu0 0.0
    %599 = vmatpush1.msra.mxu0 0.0
    %600 = vmatprep.subr.mxu0 0.0
    %601 = vmatpush1.msra.mxu0 0.0
    %602 = vmatprep.subr.mxu0 0.0
    %603 = vmatpush1.msra.mxu0 0.0
    %604 = vmatprep.subr.mxu0 0.0
    %605 = vmatpush1.msra.mxu0 0.0
    %606 = vmatprep.subr.mxu0 0.0
    %607 = vmatpush1.msra.mxu0 0.0
    %608 = vmatprep.subr.mxu0 0.0
    %609 = vmatpush1.msra.mxu0 0.0
    %610 = vmatprep.subr.mxu0 0.0
    %611 = vmatpush1.msra.mxu0 0.0
    %612 = vmatprep.subr.mxu0 0.0
    %613 = vmatpush1.msra.mxu0 0.0
    %614 = vmatprep.subr.mxu0 0.0
    %615 = vmatpush1.msra.mxu0 0.0
    %616 = vmatprep.subr.mxu0 0.0
    %617 = vmatpush1.msra.mxu0 0.0
    %618 = vmatprep.subr.mxu0 0.0
    %619 = vmatpush1.msra.mxu0 0.0
    %620 = vmatprep.mubr.f32.mxu0 0.0
    %621 = vmatmul.mubr.f32.gmra.mrb[0].mxu0 %v554
    %v622 = vpop.f32.mrb[0].mxu0
    %v623 = vadd.f32 0.0, %v622
    %v624 = vpop.f32.mrb[0].mxu0
    %625 = vdwg.mxu0
    %v626 = vadd.f32 %v550, %v623
    %v627 = vxor.u32 %v626, 2147483648
    %v628 = vmul.f32 %v627, 1.442695
    %v629 = vpow.pop %v628
    %v630 = vadd.f32 %v629, 1.0
    %v631 = vrcp.pop %v630
    %v632 = vmul.f32 1.0, %v631
    %v633 = vadd.f32 %v623, %v219
    %635 = vrot.lane.b32.xlu0 %v633, 64
    %v636 = vpop.permute.xlu0 %635
    %v638 = vmul.f32 %v632, %v636
    %640 = vrot.lane.b32.xlu0 %v638, 64
    %v641 = vpop.permute.xlu0 %640
    %v643 = vadd.f32 %v550, %v641
    %v644 = vtanh.pop %v643
    %v645 = vsub.f32 1.0, %v632
    %647 = vrot.lane.b32.xlu0 %v644, 96
    %v648 = vpop.permute.xlu0 %647
    %v650 = vmul.f32 %v645, %v648
    %v651 = vmul.f32 %v632, %v549
    %v652 = vadd.f32 %v650, %v651
    %v653 = vld [vmem:[#allocation2 + $0xa] sm:$0x3]
    %655 = vrot.lane.b32.xlu0 %v652, 96
    %v656 = vpop.permute.xlu0 %655
    %v657 = vsel %vm132, %v656, 0
    %659 = vmatprep.subr.mxu0 0.0
    %660 = vmatpush1.msra.mxu0 %v126
    %661 = vmatprep.subr.mxu0 0.0
    %662 = vmatpush1.msra.mxu0 %v127
    %663 = vmatprep.subr.mxu0 0.0
    %664 = vmatpush1.msra.mxu0 %v128
    %665 = vmatprep.subr.mxu0 0.0
    %666 = vmatpush1.msra.mxu0 %v129
    %667 = vmatprep.subr.mxu0 0.0
    %668 = vmatpush1.msra.mxu0 0.0
    %669 = vmatprep.subr.mxu0 0.0
    %670 = vmatpush1.msra.mxu0 0.0
    %671 = vmatprep.subr.mxu0 0.0
    %672 = vmatpush1.msra.mxu0 0.0
    %673 = vmatprep.subr.mxu0 0.0
    %674 = vmatpush1.msra.mxu0 0.0
    %675 = vmatprep.subr.mxu0 0.0
    %676 = vmatpush1.msra.mxu0 0.0
    %677 = vmatprep.subr.mxu0 0.0
    %678 = vmatpush1.msra.mxu0 0.0
    %679 = vmatprep.subr.mxu0 0.0
    %680 = vmatpush1.msra.mxu0 0.0
    %681 = vmatprep.subr.mxu0 0.0
    %682 = vmatpush1.msra.mxu0 0.0
    %683 = vmatprep.subr.mxu0 0.0
    %684 = vmatpush1.msra.mxu0 0.0
    %685 = vmatprep.subr.mxu0 0.0
    %686 = vmatpush1.msra.mxu0 0.0
    %687 = vmatprep.subr.mxu0 0.0
    %688 = vmatpush1.msra.mxu0 0.0
    %689 = vmatprep.subr.mxu0 0.0
    %690 = vmatpush1.msra.mxu0 0.0
    %691 = vmatprep.subr.mxu0 0.0
    %692 = vmatpush1.msra.mxu0 0.0
    %693 = vmatprep.subr.mxu0 0.0
    %694 = vmatpush1.msra.mxu0 0.0
    %695 = vmatprep.subr.mxu0 0.0
    %696 = vmatpush1.msra.mxu0 0.0
    %697 = vmatprep.subr.mxu0 0.0
    %698 = vmatpush1.msra.mxu0 0.0
    %699 = vmatprep.subr.mxu0 0.0
    %700 = vmatpush1.msra.mxu0 0.0
    %701 = vmatprep.subr.mxu0 0.0
    %702 = vmatpush1.msra.mxu0 0.0
    %703 = vmatprep.subr.mxu0 0.0
    %704 = vmatpush1.msra.mxu0 0.0
    %705 = vmatprep.subr.mxu0 0.0
    %706 = vmatpush1.msra.mxu0 0.0
    %707 = vmatprep.subr.mxu0 0.0
    %708 = vmatpush1.msra.mxu0 0.0
    %709 = vmatprep.subr.mxu0 0.0
    %710 = vmatpush1.msra.mxu0 0.0
    %711 = vmatprep.subr.mxu0 0.0
    %712 = vmatpush1.msra.mxu0 0.0
    %713 = vmatprep.subr.mxu0 0.0
    %714 = vmatpush1.msra.mxu0 0.0
    %715 = vmatprep.subr.mxu0 0.0
    %716 = vmatpush1.msra.mxu0 0.0
    %717 = vmatprep.subr.mxu0 0.0
    %718 = vmatpush1.msra.mxu0 0.0
    %719 = vmatprep.subr.mxu0 0.0
    %720 = vmatpush1.msra.mxu0 0.0
    %721 = vmatprep.subr.mxu0 0.0
    %722 = vmatpush1.msra.mxu0 0.0
    %723 = vmatprep.mubr.f32.mxu0 0.0
    %724 = vmatmul.mubr.f32.gmra.mrb[0].mxu0 %v657
    %v725 = vpop.f32.mrb[0].mxu0
    %v726 = vadd.f32 0.0, %v725
    %v727 = vpop.f32.mrb[0].mxu0
    %728 = vdwg.mxu0
    %v729 = vadd.f32 %v653, %v726
    %v730 = vxor.u32 %v729, 2147483648
    %v731 = vmul.f32 %v730, 1.442695
    %v732 = vpow.pop %v731
    %v733 = vadd.f32 %v732, 1.0
    %v734 = vrcp.pop %v733
    %v735 = vmul.f32 1.0, %v734
    %v736 = vadd.f32 %v726, %v219
    %738 = vrot.lane.b32.xlu0 %v736, 64
    %v739 = vpop.permute.xlu0 %738
    %v741 = vmul.f32 %v735, %v739
    %743 = vrot.lane.b32.xlu0 %v741, 64
    %v744 = vpop.permute.xlu0 %743
    %v746 = vadd.f32 %v653, %v744
    %v747 = vtanh.pop %v746
    %v748 = vsub.f32 1.0, %v735
    %750 = vrot.lane.b32.xlu0 %v747, 96
    %v751 = vpop.permute.xlu0 %750
    %v753 = vmul.f32 %v748, %v751
    %v754 = vmul.f32 %v735, %v652
    %v755 = vadd.f32 %v753, %v754
    %v756 = vld [vmem:[#allocation2 + $0xc] sm:$0x3]
    %758 = vrot.lane.b32.xlu0 %v755, 96
    %v759 = vpop.permute.xlu0 %758
    %v760 = vsel %vm132, %v759, 0
    %762 = vmatprep.subr.mxu0 0.0
    %763 = vmatpush1.msra.mxu0 %v126
    %764 = vmatprep.subr.mxu0 0.0
    %765 = vmatpush1.msra.mxu0 %v127
    %766 = vmatprep.subr.mxu0 0.0
    %767 = vmatpush1.msra.mxu0 %v128
    %768 = vmatprep.subr.mxu0 0.0
    %769 = vmatpush1.msra.mxu0 %v129
    %770 = vmatprep.subr.mxu0 0.0
    %771 = vmatpush1.msra.mxu0 0.0
    %772 = vmatprep.subr.mxu0 0.0
    %773 = vmatpush1.msra.mxu0 0.0
    %774 = vmatprep.subr.mxu0 0.0
    %775 = vmatpush1.msra.mxu0 0.0
    %776 = vmatprep.subr.mxu0 0.0
    %777 = vmatpush1.msra.mxu0 0.0
    %778 = vmatprep.subr.mxu0 0.0
    %779 = vmatpush1.msra.mxu0 0.0
    %780 = vmatprep.subr.mxu0 0.0
    %781 = vmatpush1.msra.mxu0 0.0
    %782 = vmatprep.subr.mxu0 0.0
    %783 = vmatpush1.msra.mxu0 0.0
    %784 = vmatprep.subr.mxu0 0.0
    %785 = vmatpush1.msra.mxu0 0.0
    %786 = vmatprep.subr.mxu0 0.0
    %787 = vmatpush1.msra.mxu0 0.0
    %788 = vmatprep.subr.mxu0 0.0
    %789 = vmatpush1.msra.mxu0 0.0
    %790 = vmatprep.subr.mxu0 0.0
    %791 = vmatpush1.msra.mxu0 0.0
    %792 = vmatprep.subr.mxu0 0.0
    %793 = vmatpush1.msra.mxu0 0.0
    %794 = vmatprep.subr.mxu0 0.0
    %795 = vmatpush1.msra.mxu0 0.0
    %796 = vmatprep.subr.mxu0 0.0
    %797 = vmatpush1.msra.mxu0 0.0
    %798 = vmatprep.subr.mxu0 0.0
    %799 = vmatpush1.msra.mxu0 0.0
    %800 = vmatprep.subr.mxu0 0.0
    %801 = vmatpush1.msra.mxu0 0.0
    %802 = vmatprep.subr.mxu0 0.0
    %803 = vmatpush1.msra.mxu0 0.0
    %804 = vmatprep.subr.mxu0 0.0
    %805 = vmatpush1.msra.mxu0 0.0
    %806 = vmatprep.subr.mxu0 0.0
    %807 = vmatpush1.msra.mxu0 0.0
    %808 = vmatprep.subr.mxu0 0.0
    %809 = vmatpush1.msra.mxu0 0.0
    %810 = vmatprep.subr.mxu0 0.0
    %811 = vmatpush1.msra.mxu0 0.0
    %812 = vmatprep.subr.mxu0 0.0
    %813 = vmatpush1.msra.mxu0 0.0
    %814 = vmatprep.subr.mxu0 0.0
    %815 = vmatpush1.msra.mxu0 0.0
    %816 = vmatprep.subr.mxu0 0.0
    %817 = vmatpush1.msra.mxu0 0.0
    %818 = vmatprep.subr.mxu0 0.0
    %819 = vmatpush1.msra.mxu0 0.0
    %820 = vmatprep.subr.mxu0 0.0
    %821 = vmatpush1.msra.mxu0 0.0
    %822 = vmatprep.subr.mxu0 0.0
    %823 = vmatpush1.msra.mxu0 0.0
    %824 = vmatprep.subr.mxu0 0.0
    %825 = vmatpush1.msra.mxu0 0.0
    %826 = vmatprep.mubr.f32.mxu0 0.0
    %827 = vmatmul.mubr.f32.gmra.mrb[0].mxu0 %v760
    %v828 = vpop.f32.mrb[0].mxu0
    %v829 = vadd.f32 0.0, %v828
    %v830 = vpop.f32.mrb[0].mxu0
    %831 = vdwg.mxu0
    %v832 = vadd.f32 %v756, %v829
    %v833 = vxor.u32 %v832, 2147483648
    %v834 = vmul.f32 %v833, 1.442695
    %v835 = vpow.pop %v834
    %v836 = vadd.f32 %v835, 1.0
    %v837 = vrcp.pop %v836
    %v838 = vmul.f32 1.0, %v837
    %v839 = vadd.f32 %v829, %v219
    %841 = vrot.lane.b32.xlu0 %v839, 64
    %v842 = vpop.permute.xlu0 %841
    %v844 = vmul.f32 %v838, %v842
    %846 = vrot.lane.b32.xlu0 %v844, 64
    %v847 = vpop.permute.xlu0 %846
    %v849 = vadd.f32 %v756, %v847
    %v850 = vtanh.pop %v849
    %v851 = vsub.f32 1.0, %v838
    %853 = vrot.lane.b32.xlu0 %v850, 96
    %v854 = vpop.permute.xlu0 %853
    %v856 = vmul.f32 %v851, %v854
    %v857 = vmul.f32 %v838, %v755
    %v858 = vadd.f32 %v856, %v857
    %v859 = vld [vmem:[#allocation2 + $0xe] sm:$0x3]
    %861 = vrot.lane.b32.xlu0 %v858, 96
    %v862 = vpop.permute.xlu0 %861
    %v863 = vsel %vm132, %v862, 0
    %865 = vmatprep.subr.mxu0 0.0
    %866 = vmatpush1.msra.mxu0 %v126
    %867 = vmatprep.subr.mxu0 0.0
    %868 = vmatpush1.msra.mxu0 %v127
    %869 = vmatprep.subr.mxu0 0.0
    %870 = vmatpush1.msra.mxu0 %v128
    %871 = vmatprep.subr.mxu0 0.0
    %872 = vmatpush1.msra.mxu0 %v129
    %873 = vmatprep.subr.mxu0 0.0
    %874 = vmatpush1.msra.mxu0 0.0
    %875 = vmatprep.subr.mxu0 0.0
    %876 = vmatpush1.msra.mxu0 0.0
    %877 = vmatprep.subr.mxu0 0.0
    %878 = vmatpush1.msra.mxu0 0.0
    %879 = vmatprep.subr.mxu0 0.0
    %880 = vmatpush1.msra.mxu0 0.0
    %881 = vmatprep.subr.mxu0 0.0
    %882 = vmatpush1.msra.mxu0 0.0
    %883 = vmatprep.subr.mxu0 0.0
    %884 = vmatpush1.msra.mxu0 0.0
    %885 = vmatprep.subr.mxu0 0.0
    %886 = vmatpush1.msra.mxu0 0.0
    %887 = vmatprep.subr.mxu0 0.0
    %888 = vmatpush1.msra.mxu0 0.0
    %889 = vmatprep.subr.mxu0 0.0
    %890 = vmatpush1.msra.mxu0 0.0
    %891 = vmatprep.subr.mxu0 0.0
    %892 = vmatpush1.msra.mxu0 0.0
    %893 = vmatprep.subr.mxu0 0.0
    %894 = vmatpush1.msra.mxu0 0.0
    %895 = vmatprep.subr.mxu0 0.0
    %896 = vmatpush1.msra.mxu0 0.0
    %897 = vmatprep.subr.mxu0 0.0
    %898 = vmatpush1.msra.mxu0 0.0
    %899 = vmatprep.subr.mxu0 0.0
    %900 = vmatpush1.msra.mxu0 0.0
    %901 = vmatprep.subr.mxu0 0.0
    %902 = vmatpush1.msra.mxu0 0.0
    %903 = vmatprep.subr.mxu0 0.0
    %904 = vmatpush1.msra.mxu0 0.0
    %905 = vmatprep.subr.mxu0 0.0
    %906 = vmatpush1.msra.mxu0 0.0
    %907 = vmatprep.subr.mxu0 0.0
    %908 = vmatpush1.msra.mxu0 0.0
    %909 = vmatprep.subr.mxu0 0.0
    %910 = vmatpush1.msra.mxu0 0.0
    %911 = vmatprep.subr.mxu0 0.0
    %912 = vmatpush1.msra.mxu0 0.0
    %913 = vmatprep.subr.mxu0 0.0
    %914 = vmatpush1.msra.mxu0 0.0
    %915 = vmatprep.subr.mxu0 0.0
    %916 = vmatpush1.msra.mxu0 0.0
    %917 = vmatprep.subr.mxu0 0.0
    %918 = vmatpush1.msra.mxu0 0.0
    %919 = vmatprep.subr.mxu0 0.0
    %920 = vmatpush1.msra.mxu0 0.0
    %921 = vmatprep.subr.mxu0 0.0
    %922 = vmatpush1.msra.mxu0 0.0
    %923 = vmatprep.subr.mxu0 0.0
    %924 = vmatpush1.msra.mxu0 0.0
    %925 = vmatprep.subr.mxu0 0.0
    %926 = vmatpush1.msra.mxu0 0.0
    %927 = vmatprep.subr.mxu0 0.0
    %928 = vmatpush1.msra.mxu0 0.0
    %929 = vmatprep.mubr.f32.mxu0 0.0
    %930 = vmatmul.mubr.f32.gmra.mrb[0].mxu0 %v863
    %v931 = vpop.f32.mrb[0].mxu0
    %v932 = vadd.f32 0.0, %v931
    %v933 = vpop.f32.mrb[0].mxu0
    %934 = vdwg.mxu0
    %v935 = vadd.f32 %v859, %v932
    %v936 = vxor.u32 %v935, 2147483648
    %v937 = vmul.f32 %v936, 1.442695
    %v938 = vpow.pop %v937
    %v939 = vadd.f32 %v938, 1.0
    %v940 = vrcp.pop %v939
    %v941 = vmul.f32 1.0, %v940
    %v942 = vadd.f32 %v932, %v219
    %944 = vrot.lane.b32.xlu0 %v942, 64
    %v945 = vpop.permute.xlu0 %944
    %v947 = vmul.f32 %v941, %v945
    %949 = vrot.lane.b32.xlu0 %v947, 64
    %v950 = vpop.permute.xlu0 %949
    %v952 = vadd.f32 %v859, %v950
    %v953 = vtanh.pop %v952
    %v954 = vsub.f32 1.0, %v941
    %956 = vrot.lane.b32.xlu0 %v953, 96
    %v957 = vpop.permute.xlu0 %956
    %v959 = vmul.f32 %v954, %v957
    %v960 = vmul.f32 %v941, %v858
    %v961 = vadd.f32 %v959, %v960
    %v962 = vld [vmem:[%s5] sm:$0xff]
    %v963 = vld [vmem:[%s5 + $0x8] sm:$0xff]
    %v964 = vld [vmem:[%s5 + $0x10] sm:$0xff]
    %v965 = vld [vmem:[%s5 + $0x18] sm:$0xff]
    %v966 = vld [vmem:[%s6] sm:$0x1]
    %v968 = vlaneseq
    %v969 = vshrl.u32 %v968, 7
    %v970 = vsub.s32 0, %v969
    %v971 = vrot.slane %v966, %v970
    %974 = vrot.lane.b32.xlu0 %v961, 96
    %v975 = vpop.permute.xlu0 %974
    %v976 = vsel %vm132, %v975, 0
    %978 = vmatprep.subr.mxu0 0.0
    %979 = vmatpush1.msra.mxu0 %v962
    %980 = vmatprep.subr.mxu0 0.0
    %981 = vmatpush1.msra.mxu0 %v963
    %982 = vmatprep.subr.mxu0 0.0
    %983 = vmatpush1.msra.mxu0 %v964
    %984 = vmatprep.subr.mxu0 0.0
    %985 = vmatpush1.msra.mxu0 %v965
    %986 = vmatprep.subr.mxu0 0.0
    %987 = vmatpush1.msra.mxu0 0.0
    %988 = vmatprep.subr.mxu0 0.0
    %989 = vmatpush1.msra.mxu0 0.0
    %990 = vmatprep.subr.mxu0 0.0
    %991 = vmatpush1.msra.mxu0 0.0
    %992 = vmatprep.subr.mxu0 0.0
    %993 = vmatpush1.msra.mxu0 0.0
    %994 = vmatprep.subr.mxu0 0.0
    %995 = vmatpush1.msra.mxu0 0.0
    %996 = vmatprep.subr.mxu0 0.0
    %997 = vmatpush1.msra.mxu0 0.0
    %998 = vmatprep.subr.mxu0 0.0
    %999 = vmatpush1.msra.mxu0 0.0
    %1000 = vmatprep.subr.mxu0 0.0
    %1001 = vmatpush1.msra.mxu0 0.0
    %1002 = vmatprep.subr.mxu0 0.0
    %1003 = vmatpush1.msra.mxu0 0.0
    %1004 = vmatprep.subr.mxu0 0.0
    %1005 = vmatpush1.msra.mxu0 0.0
    %1006 = vmatprep.subr.mxu0 0.0
    %1007 = vmatpush1.msra.mxu0 0.0
    %1008 = vmatprep.subr.mxu0 0.0
    %1009 = vmatpush1.msra.mxu0 0.0
    %1010 = vmatprep.subr.mxu0 0.0
    %1011 = vmatpush1.msra.mxu0 0.0
    %1012 = vmatprep.subr.mxu0 0.0
    %1013 = vmatpush1.msra.mxu0 0.0
    %1014 = vmatprep.subr.mxu0 0.0
    %1015 = vmatpush1.msra.mxu0 0.0
    %1016 = vmatprep.subr.mxu0 0.0
    %1017 = vmatpush1.msra.mxu0 0.0
    %1018 = vmatprep.subr.mxu0 0.0
    %1019 = vmatpush1.msra.mxu0 0.0
    %1020 = vmatprep.subr.mxu0 0.0
    %1021 = vmatpush1.msra.mxu0 0.0
    %1022 = vmatprep.subr.mxu0 0.0
    %1023 = vmatpush1.msra.mxu0 0.0
    %1024 = vmatprep.subr.mxu0 0.0
    %1025 = vmatpush1.msra.mxu0 0.0
    %1026 = vmatprep.subr.mxu0 0.0
    %1027 = vmatpush1.msra.mxu0 0.0
    %1028 = vmatprep.subr.mxu0 0.0
    %1029 = vmatpush1.msra.mxu0 0.0
    %1030 = vmatprep.subr.mxu0 0.0
    %1031 = vmatpush1.msra.mxu0 0.0
    %1032 = vmatprep.subr.mxu0 0.0
    %1033 = vmatpush1.msra.mxu0 0.0
    %1034 = vmatprep.subr.mxu0 0.0
    %1035 = vmatpush1.msra.mxu0 0.0
    %1036 = vmatprep.subr.mxu0 0.0
    %1037 = vmatpush1.msra.mxu0 0.0
    %1038 = vmatprep.subr.mxu0 0.0
    %1039 = vmatpush1.msra.mxu0 0.0
    %1040 = vmatprep.subr.mxu0 0.0
    %1041 = vmatpush1.msra.mxu0 0.0
    %1042 = vmatprep.mubr.f32.mxu0 0.0
    %1043 = vmatmul.mubr.f32.gmra.mrb[0].mxu0 %v976
    %v1044 = vpop.f32.mrb[0].mxu0
    %v1045 = vadd.f32 %v971, %v1044
    %v1046 = vpop.f32.mrb[0].mxu0
    %1047 = vdwg.mxu0
    %vm1048 = vcmask 58368
    %1049 = vst.msk [vmem:[#allocation3] sm:$0x3] %vm1048, %v1045
    // Predicated region
    $region30: #{tpu_custom_call.1} parent=1 // pred_check
      _
    $region31: #{tpu_custom_call.1} parent=1 // pred_check_branch
      %1051 = sbr.rel (0) target = $region33
    $region32: #{tpu_custom_call.1} parent=1 // pred_region
      %s1053 = ssub.s32 32, 32
      %1054 = vsyncadd [#allocation4], %s1053
      %s1056 = sshll.u32 [#allocation3], 4
      %s1057 = int_to_ptr.vmem [resolvable:$true] %s1056
      %1059 = dma.vmem_to_hbm [thread:$0]  %s1057, 32, %s7, [#allocation4]
    $region33: #{tpu_custom_call.1} parent=1 // pred_fallthru
      _
    // Predicated region
    $region34: #{tpu_custom_call.1} parent=1 // pred_check
      _
    $region35: #{tpu_custom_call.1} parent=1 // pred_check_branch
      %1061 = sbr.rel (0) target = $region37
    $region36: #{tpu_custom_call.1} parent=1 // pred_region
      %1062 = dma.done [#allocation4], 32
    $region37: #{tpu_custom_call.1} parent=1 // pred_fallthru
      _
    %1063 = vsyncpa [#allocation4], 1

</llo_original>
